<compile_context>
chip_gen: v7x
topology: tpu7x:2x2x1
jax: 0.10.0
libtpu: 0.0.40
codegen_flags: <defaults>
</compile_context>

<pallas_src>
import functools

import jax
import jax.numpy as jnp
import numpy as np
from jax.experimental import pallas as pl
from jax.experimental.pallas import tpu as pltpu


def channel_attention_kernel(x_ref, w1t_ref, w2t_ref, o_ref, *, hw_valid, inv_hw):
    # x_ref  : (B_t, C, HW_pad)  current batch tile (bf16 or f32)
    # w1t_ref: (C, C_hid)        first 1x1 conv weight, pre-transposed, f32
    # w2t_ref: (C_hid, C)        second 1x1 conv weight, pre-transposed, f32
    # o_ref  : (B_t, C, HW_pad)
    xb = x_ref[...].astype(jnp.float32)                     # f32 compute (v5e has no bf16 VPU)
    hw_pad = xb.shape[2]

    # Channel descriptors.  Spatial padding is zeros, so the sum is unaffected and we
    # divide by the true HW; the max is lane-masked only when padding exists.
    avg = jnp.sum(xb, axis=2) * inv_hw                      # (B_t, C)
    if hw_valid == hw_pad:
        mx = jnp.max(xb, axis=2)                            # (B_t, C)
    else:
        lane = jax.lax.broadcasted_iota(jnp.int32, xb.shape, 2)
        mx = jnp.max(jnp.where(lane < hw_valid, xb, -jnp.inf), axis=2)

    # Shared 1x1-conv MLP (f32 on the MXU).  The two branches stay separate: the kernel
    # is HBM-bound, so 4 tiny dots cost nothing and avoid the misaligned concat/slice.
    w1t = w1t_ref[...]
    w2t = w2t_ref[...]

    def fc(v):                                              # v: (B_t, C)
        h = jnp.maximum(jnp.dot(v, w1t, preferred_element_type=jnp.float32), 0.0)
        return jnp.dot(h, w2t, preferred_element_type=jnp.float32)

    scale = jax.nn.sigmoid(fc(avg) + fc(mx))                # (B_t, C) f32
    o_ref[...] = (xb * scale[:, :, None]).astype(o_ref.dtype)


def _tpu_hw():
    """Best-effort (never-throwing) query of per-core VMEM bytes and TensorCore count."""
    vmem_cap = 64 * 1024 * 1024     # conservative default (v7x per-TC VMEM)
    num_cores = 1                   # conservative default: don't force grid splits
    try:
        info = pltpu.get_tpu_info()
        v = getattr(info, "vmem_capacity_bytes", None)
        if v:
            vmem_cap = int(v)
        for name in ("num_tensorcores", "tensorcores_per_chip", "num_cores",
                     "cores_per_chip"):
            c = getattr(info, name, None)
            if c:
                num_cores = int(c)
                break
    except Exception:
        pass
    return vmem_cap, num_cores


def channel_attention_block(x, w1, w2, *, io_dtype=jnp.bfloat16):
    """x: (N, C, H, W); w1: (C_hid, C); w2: (C, C_hid).  Returns (N, C, H, W) in io_dtype."""
    N, C, H, W = x.shape
    HW = H * W
    HW_pad = ((HW + 127) // 128) * 128                      # lane-dense, unmasked stores

    x_flat = x.reshape(N, C, HW).astype(io_dtype)           # bf16 I/O: halves HBM traffic
    if HW_pad != HW:
        x_flat = jnp.pad(x_flat, ((0, 0), (0, 0), (0, HW_pad - HW)))

    # Pre-transpose the tiny weights once in the wrapper (layout glue, not compute).
    w1_t = jnp.transpose(w1).astype(jnp.float32)            # (C, C_hid)
    w2_t = jnp.transpose(w2).astype(jnp.float32)            # (C_hid, C)
    c_hid = w1_t.shape[1]

    # Per-generation tiling: ~96 MiB scoped VMEM / 16 MiB blocks on 128-MiB chips
    # (v5e/v6e), ~48 MiB / 8 MiB on 64-MiB v7x.  Block budget = in+out double buffers
    # (4x block) plus headroom; no deeper Buffered() pipelining (DMA-throughput bound).
    vmem_cap, num_cores = _tpu_hw()
    vmem_limit = min(100 << 20, (vmem_cap * 3) // 4)
    block_bytes = vmem_limit // 6

    itemsize = jnp.dtype(io_dtype).itemsize
    bytes_per_image = C * HW_pad * itemsize
    b_tile = max(1, min(N, block_bytes // max(1, bytes_per_image)))
    if num_cores >= 2 and N > 1 and pl.cdiv(N, b_tile) < 2:
        # Only on multi-TC chips (v7x): >=2 grid steps so the "parallel" batch axis
        # shards across both TensorCores.  On single-TC v5e/v6e this would be overhead.
        b_tile = pl.cdiv(N, 2)
    if b_tile > 8:
        b_tile = (b_tile // 8) * 8                          # sublane-aligned MXU M dim

    # If a single image's block needs more than the default budget, raise the scoped
    # limit up to (physical - 8 MiB).  See TODO(synk) at top for the two-pass fallback.
    vmem_limit = max(vmem_limit,
                     min(vmem_cap - (8 << 20),
                         4 * b_tile * bytes_per_image + (8 << 20)))

    grid = (pl.cdiv(N, b_tile),)

    kernel = functools.partial(channel_attention_kernel,
                               hw_valid=HW, inv_hw=1.0 / HW)

    out_flat = pl.pallas_call(
        kernel,
        out_shape=jax.ShapeDtypeStruct((N, C, HW_pad), io_dtype),
        grid_spec=pltpu.PrefetchScalarGridSpec(
            num_scalar_prefetch=0,
            grid=grid,
            in_specs=[
                pl.BlockSpec((b_tile, C, HW_pad), lambda b: (b, 0, 0)),
                pl.BlockSpec((C, c_hid), lambda b: (0, 0)),
                pl.BlockSpec((c_hid, C), lambda b: (0, 0)),
            ],
            out_specs=pl.BlockSpec((b_tile, C, HW_pad), lambda b: (b, 0, 0)),
        ),
        compiler_params=pltpu.CompilerParams(
            dimension_semantics=("parallel",),
            vmem_limit_bytes=int(vmem_limit),
        ),
    )(x_flat, w1_t, w2_t)

    return out_flat[:, :, :HW].reshape(N, C, H, W)


def reference(x, w1, w2):
    # Pure-JAX (f32) reference of the PyTorch forward pass.
    avg = jnp.mean(x, axis=(2, 3))                          # (N, C)
    mx = jnp.max(x, axis=(2, 3))                            # (N, C)

    def fc(v):                                              # v: (N, C)
        h = jnp.maximum(v @ w1.T, 0.0)                      # (N, C_hid)
        return h @ w2.T                                     # (N, C)

    scale = jax.nn.sigmoid(fc(avg) + fc(mx))                # (N, C)
    return x * scale[:, :, None, None]


def _run_case(key, N, C, H, W, reduction_ratio=16):
    C_hid = C // reduction_ratio
    kx, k1, k2 = jax.random.split(key, 3)
    x = jax.random.normal(kx, (N, C, H, W), dtype=jnp.float32)
    # Conv2d(C, C_hid, 1, bias=False) weight (C_hid, C, 1, 1) -> (C_hid, C)
    w1 = jax.random.normal(k1, (C_hid, C), dtype=jnp.float32) * 0.1
    # Conv2d(C_hid, C, 1, bias=False) weight (C, C_hid, 1, 1) -> (C, C_hid)
    w2 = jax.random.normal(k2, (C, C_hid), dtype=jnp.float32) * 0.1

    out = channel_attention_block(x, w1, w2)                # bf16 I/O, f32 math inside
    out = jax.block_until_ready(out)

    # Compare against the f32 reference evaluated on the bf16-rounded input; the only
    # remaining differences are f32 accumulation order and the final bf16 store.
    x_q = x.astype(jnp.bfloat16).astype(jnp.float32)
    ref = reference(x_q, w1, w2)
    np.testing.assert_allclose(
        np.asarray(jnp.asarray(out, dtype=jnp.float32)),
        np.asarray(ref),
        rtol=1e-2, atol=1e-2,
    )


if __name__ == "__main__":
    key = jax.random.PRNGKey(0)
    k_a, k_b = jax.random.split(key)

    # C=64, reduction_ratio=16 -> C_hid=4.  HW=256 is already a multiple of 128.
    _run_case(k_a, N=2, C=64, H=16, W=16)
    # Non-multiple spatial size (HW=100 -> padded to 128) exercises the masked-max path.
    _run_case(k_b, N=2, C=64, H=10, W=10)

    print("KERNEL_OK")
</pallas_src>

<mosaic_0001>
module attributes {stable_mosaic.version = 11 : i64} {
  func.func @channel_attention_kernel(%arg0: i32, %arg1: memref<2x64x256xbf16, #tpu.memory_space<vmem>>, %arg2: memref<64x4xf32, #tpu.memory_space<vmem>>, %arg3: memref<4x64xf32, #tpu.memory_space<vmem>>, %arg4: memref<2x64x256xbf16, #tpu.memory_space<vmem>>) attributes {dimension_semantics = [#tpu.dimension_semantics<parallel>], iteration_bounds = array<i64: 1>, scalar_prefetch = 0 : i64, scratch_operands = 0 : i64, tpu.core_type = #tpu.core_type<tc>, window_params = [{transform_indices = @transform_0, window_bounds = array<i64: 2, 64, 256>}, {pipeline_mode = #tpu.pipeline_mode<synchronous>, transform_indices = @transform_1, window_bounds = array<i64: 64, 4>}, {pipeline_mode = #tpu.pipeline_mode<synchronous>, transform_indices = @transform_2, window_bounds = array<i64: 4, 64>}, {transform_indices = @transform_3, window_bounds = array<i64: 2, 64, 256>}]} {
    %c0 = arith.constant 0 : index
    %c0_0 = arith.constant 0 : index
    %c0_1 = arith.constant 0 : index
    %0 = vector.load %arg1[%c0, %c0_0, %c0_1] : memref<2x64x256xbf16, #tpu.memory_space<vmem>>, vector<2x64x256xbf16>
    %1 = arith.extf %0 : vector<2x64x256xbf16> to vector<2x64x256xf32>
    %cst = arith.constant dense<0.000000e+00> : vector<2x64xf32>
    %2 = vector.multi_reduction <add>, %1, %cst [2] : vector<2x64x256xf32> to vector<2x64xf32>
    %cst_2 = arith.constant 3.906250e-03 : f32
    %3 = vector.broadcast %cst_2 : f32 to vector<2x64xf32>
    %4 = arith.mulf %2, %3 : vector<2x64xf32>
    %cst_3 = arith.constant dense<0xFF800000> : vector<2x64xf32>
    %5 = vector.multi_reduction <maximumf>, %1, %cst_3 [2] : vector<2x64x256xf32> to vector<2x64xf32>
    %c0_4 = arith.constant 0 : index
    %c0_5 = arith.constant 0 : index
    %6 = vector.load %arg2[%c0_4, %c0_5] : memref<64x4xf32, #tpu.memory_space<vmem>>, vector<64x4xf32>
    %c0_6 = arith.constant 0 : index
    %c0_7 = arith.constant 0 : index
    %7 = vector.load %arg3[%c0_6, %c0_7] : memref<4x64xf32, #tpu.memory_space<vmem>>, vector<4x64xf32>
    %cst_8 = arith.constant dense<0.000000e+00> : vector<2x4xf32>
    %8 = tpu.matmul %4, %6, %cst_8 {dimension_numbers = #tpu.dot_dimension_numbers<[1], [0], [0], [1], [0, 0, 1, 1], [], []>} : vector<2x64xf32>, vector<64x4xf32>, vector<2x4xf32> -> vector<2x4xf32>
    %cst_9 = arith.constant 0.000000e+00 : f32
    %9 = vector.broadcast %cst_9 : f32 to vector<2x4xf32>
    %10 = arith.maximumf %8, %9 : vector<2x4xf32>
    %cst_10 = arith.constant dense<0.000000e+00> : vector<2x64xf32>
    %11 = tpu.matmul %10, %7, %cst_10 {dimension_numbers = #tpu.dot_dimension_numbers<[1], [0], [0], [1], [0, 0, 1, 1], [], []>} : vector<2x4xf32>, vector<4x64xf32>, vector<2x64xf32> -> vector<2x64xf32>
    %cst_11 = arith.constant dense<0.000000e+00> : vector<2x4xf32>
    %12 = tpu.matmul %5, %6, %cst_11 {dimension_numbers = #tpu.dot_dimension_numbers<[1], [0], [0], [1], [0, 0, 1, 1], [], []>} : vector<2x64xf32>, vector<64x4xf32>, vector<2x4xf32> -> vector<2x4xf32>
    %cst_12 = arith.constant 0.000000e+00 : f32
    %13 = vector.broadcast %cst_12 : f32 to vector<2x4xf32>
    %14 = arith.maximumf %12, %13 : vector<2x4xf32>
    %cst_13 = arith.constant dense<0.000000e+00> : vector<2x64xf32>
    %15 = tpu.matmul %14, %7, %cst_13 {dimension_numbers = #tpu.dot_dimension_numbers<[1], [0], [0], [1], [0, 0, 1, 1], [], []>} : vector<2x4xf32>, vector<4x64xf32>, vector<2x64xf32> -> vector<2x64xf32>
    %16 = arith.addf %11, %15 : vector<2x64xf32>
    %17 = arith.negf %16 : vector<2x64xf32>
    %18 = math.exp %17 : vector<2x64xf32>
    %cst_14 = arith.constant 1.000000e+00 : f32
    %19 = vector.broadcast %cst_14 : f32 to vector<2x64xf32>
    %20 = arith.addf %19, %18 : vector<2x64xf32>
    %21 = arith.divf %19, %20 : vector<2x64xf32>
    %22 = vector.shape_cast %21 : vector<2x64xf32> to vector<2x64x1xf32>
    %23 = vector.broadcast %22 : vector<2x64x1xf32> to vector<2x64x256xf32>
    %24 = arith.mulf %1, %23 : vector<2x64x256xf32>
    %25 = arith.truncf %24 : vector<2x64x256xf32> to vector<2x64x256xbf16>
    %c0_15 = arith.constant 0 : index
    %c0_16 = arith.constant 0 : index
    %c0_17 = arith.constant 0 : index
    %26 = vector.load %arg4[%c0_15, %c0_16, %c0_17] : memref<2x64x256xbf16, #tpu.memory_space<vmem>>, vector<2x64x256xbf16>
    tpu.vector_store %arg4[%c0_15, %c0_16, %c0_17], %25 {strides = array<i32>} : memref<2x64x256xbf16, #tpu.memory_space<vmem>>, vector<2x64x256xbf16>,
    return
  }
  func.func @transform_0(%arg0: i32) -> (i32, i32, i32) {
    %c0_i32 = arith.constant 0 : i32
    %c0_i32_0 = arith.constant 0 : i32
    %c0_i32_1 = arith.constant 0 : i32
    return %arg0, %c0_i32, %c0_i32_0 : i32, i32, i32
  }
  func.func @transform_1(%arg0: i32) -> (i32, i32) {
    %c0_i32 = arith.constant 0 : i32
    %c0_i32_0 = arith.constant 0 : i32
    %c0_i32_1 = arith.constant 0 : i32
    return %c0_i32, %c0_i32_0 : i32, i32
  }
  func.func @transform_2(%arg0: i32) -> (i32, i32) {
    %c0_i32 = arith.constant 0 : i32
    %c0_i32_0 = arith.constant 0 : i32
    %c0_i32_1 = arith.constant 0 : i32
    return %c0_i32, %c0_i32_0 : i32, i32
  }
  func.func @transform_3(%arg0: i32) -> (i32, i32, i32) {
    %c0_i32 = arith.constant 0 : i32
    %c0_i32_0 = arith.constant 0 : i32
    %c0_i32_1 = arith.constant 0 : i32
    return %arg0, %c0_i32, %c0_i32_0 : i32, i32, i32
  }
}

</mosaic_0001>

<llo_original>
// kernel: tpu_custom_call.1
$region0: #{tpu_custom_call.1}
  #allocation0 [shape = 'u32[]', space=smem, size = 0x4, offset = 0x4, fixed_abs, tag = 'smem constant byte address 0x4 - core index']
  #allocation1 [shape = 'u32[144,128]{1,0:T(1,128)}', space=vmem, size = 0x12000, scoped, tag = 'internal scratch']
  %s0 = inlined_call_operand.hbm [shape: bf16[2,64,256], index: 0, kind: input, shape index: {}]
  %s1 = inlined_call_operand.vmem [shape: f32[64,4], index: 1, kind: input, shape index: {}]
  %s2 = inlined_call_operand.vmem [shape: f32[4,64], index: 2, kind: input, shape index: {}]
  %s3 = inlined_call_operand.hbm [shape: bf16[2,64,256], index: 3, kind: output, shape index: {}]
  %s4 = sld [smem:[#allocation0]]
  $region26: #{tpu_custom_call.1} parent=0
    _
  %s6 = ssub.s32 1, %s4
  %s7 = scalar_select 0, %s6, %s4
  $region1: #{tpu_custom_call.1} parent=0
    #allocation2 [shape = 'u8[65536]{0}', space=vmem, size = 0x10000, scoped, tag = 'input window, operand 0, single buffered']
    #allocation3 [shape = 's32[1]{0}', space=sflag, size = 0x4, scoped, tag = 'scoped memory for tpu_custom_call.1']
    #allocation4 [shape = 's32[1]{0}', space=sflag, size = 0x4, scoped, tag = 'scoped memory for tpu_custom_call.1']
    #allocation5 [shape = 'u8[65536]{0}', space=vmem, size = 0x10000, scoped, tag = 'output window, operand 0, single buffered']
    %8 = vsyncpa [#allocation3], 0
    %9 = vsyncpa [#allocation4], 0
    // Predicated region
    $region2: #{tpu_custom_call.1} parent=1 // pred_check
      _
    $region3: #{tpu_custom_call.1} parent=1 // pred_check_branch
      %11 = sbr.rel (0) target = $region5
    $region4: #{tpu_custom_call.1} parent=1 // pred_region
      %s13 = ssub.s32 2048, 2048
      %14 = vsyncadd [#allocation3], %s13
      %s15 = sshll.u32 [#allocation2], 4
      %s16 = int_to_ptr.vmem [resolvable:$true] %s15
      %21 = dma.hbm_to_vmem [thread:$0]  %s0, 2048, %s16, [#allocation3], 128, 128, 8
    $region5: #{tpu_custom_call.1} parent=1 // pred_fallthru
      _
    // Predicated region
    $region6: #{tpu_custom_call.1} parent=1 // pred_check
      _
    $region7: #{tpu_custom_call.1} parent=1 // pred_check_branch
      %23 = sbr.rel (0) target = $region9
    $region8: #{tpu_custom_call.1} parent=1 // pred_region
      _
    $region9: #{tpu_custom_call.1} parent=1 // pred_fallthru
      _
    // Predicated region
    $region10: #{tpu_custom_call.1} parent=1 // pred_check
      _
    $region11: #{tpu_custom_call.1} parent=1 // pred_check_branch
      %25 = sbr.rel (0) target = $region13
    $region12: #{tpu_custom_call.1} parent=1 // pred_region
      _
    $region13: #{tpu_custom_call.1} parent=1 // pred_fallthru
      _
    // Predicated region
    $region14: #{tpu_custom_call.1} parent=1 // pred_check
      _
    $region15: #{tpu_custom_call.1} parent=1 // pred_check_branch
      %27 = sbr.rel (0) target = $region17
    $region16: #{tpu_custom_call.1} parent=1 // pred_region
      %28 = dma.done [#allocation3], 2048
    $region17: #{tpu_custom_call.1} parent=1 // pred_fallthru
      _
    %v29 = vld [vmem:[#allocation2] sm:$0xff]
    %v30 = vld [vmem:[#allocation2 + $0x8] sm:$0xff]
    %v31 = vld [vmem:[#allocation2 + $0x10] sm:$0xff]
    %v32 = vld [vmem:[#allocation2 + $0x18] sm:$0xff]
    %v33 = vld [vmem:[#allocation2 + $0x20] sm:$0xff]
    %v34 = vld [vmem:[#allocation2 + $0x28] sm:$0xff]
    %v35 = vld [vmem:[#allocation2 + $0x30] sm:$0xff]
    %v36 = vld [vmem:[#allocation2 + $0x38] sm:$0xff]
    %v37 = vld [vmem:[#allocation2 + $0x40] sm:$0xff]
    %v38 = vld [vmem:[#allocation2 + $0x48] sm:$0xff]
    %v39 = vld [vmem:[#allocation2 + $0x50] sm:$0xff]
    %v40 = vld [vmem:[#allocation2 + $0x58] sm:$0xff]
    %v41 = vld [vmem:[#allocation2 + $0x60] sm:$0xff]
    %v42 = vld [vmem:[#allocation2 + $0x68] sm:$0xff]
    %v43 = vld [vmem:[#allocation2 + $0x70] sm:$0xff]
    %v44 = vld [vmem:[#allocation2 + $0x78] sm:$0xff]
    %v45 = vunpack.c.l.bf16 %v29
    %v46 = vunpack.c.h.bf16 %v29
    %v47 = vunpack.c.l.bf16 %v30
    %v48 = vunpack.c.h.bf16 %v30
    %v49 = vunpack.c.l.bf16 %v31
    %v50 = vunpack.c.h.bf16 %v31
    %v51 = vunpack.c.l.bf16 %v32
    %v52 = vunpack.c.h.bf16 %v32
    %v53 = vunpack.c.l.bf16 %v33
    %v54 = vunpack.c.h.bf16 %v33
    %v55 = vunpack.c.l.bf16 %v34
    %v56 = vunpack.c.h.bf16 %v34
    %v57 = vunpack.c.l.bf16 %v35
    %v58 = vunpack.c.h.bf16 %v35
    %v59 = vunpack.c.l.bf16 %v36
    %v60 = vunpack.c.h.bf16 %v36
    %v61 = vunpack.c.l.bf16 %v37
    %v62 = vunpack.c.h.bf16 %v37
    %v63 = vunpack.c.l.bf16 %v38
    %v64 = vunpack.c.h.bf16 %v38
    %v65 = vunpack.c.l.bf16 %v39
    %v66 = vunpack.c.h.bf16 %v39
    %v67 = vunpack.c.l.bf16 %v40
    %v68 = vunpack.c.h.bf16 %v40
    %v69 = vunpack.c.l.bf16 %v41
    %v70 = vunpack.c.h.bf16 %v41
    %v71 = vunpack.c.l.bf16 %v42
    %v72 = vunpack.c.h.bf16 %v42
    %v73 = vunpack.c.l.bf16 %v43
    %v74 = vunpack.c.h.bf16 %v43
    %v75 = vunpack.c.l.bf16 %v44
    %v76 = vunpack.c.h.bf16 %v44
    %v77 = vadd.f32 %v45, %v46
    %78 = vadd.xlane.f32.xlu0 %v77
    %v79 = vpop.xlane.xlu0 %78
    %v80 = vadd.f32 %v47, %v48
    %81 = vadd.xlane.f32.xlu0 %v80
    %v82 = vpop.xlane.xlu0 %81
    %v83 = vadd.f32 %v49, %v50
    %84 = vadd.xlane.f32.xlu0 %v83
    %v85 = vpop.xlane.xlu0 %84
    %v86 = vadd.f32 %v51, %v52
    %87 = vadd.xlane.f32.xlu0 %v86
    %v88 = vpop.xlane.xlu0 %87
    %v89 = vadd.f32 %v53, %v54
    %90 = vadd.xlane.f32.xlu0 %v89
    %v91 = vpop.xlane.xlu0 %90
    %v92 = vadd.f32 %v55, %v56
    %93 = vadd.xlane.f32.xlu0 %v92
    %v94 = vpop.xlane.xlu0 %93
    %v95 = vadd.f32 %v57, %v58
    %96 = vadd.xlane.f32.xlu0 %v95
    %v97 = vpop.xlane.xlu0 %96
    %v98 = vadd.f32 %v59, %v60
    %99 = vadd.xlane.f32.xlu0 %v98
    %v100 = vpop.xlane.xlu0 %99
    %v101 = vadd.f32 %v61, %v62
    %102 = vadd.xlane.f32.xlu0 %v101
    %v103 = vpop.xlane.xlu0 %102
    %v104 = vadd.f32 %v63, %v64
    %105 = vadd.xlane.f32.xlu0 %v104
    %v106 = vpop.xlane.xlu0 %105
    %v107 = vadd.f32 %v65, %v66
    %108 = vadd.xlane.f32.xlu0 %v107
    %v109 = vpop.xlane.xlu0 %108
    %v110 = vadd.f32 %v67, %v68
    %111 = vadd.xlane.f32.xlu0 %v110
    %v112 = vpop.xlane.xlu0 %111
    %v113 = vadd.f32 %v69, %v70
    %114 = vadd.xlane.f32.xlu0 %v113
    %v115 = vpop.xlane.xlu0 %114
    %v116 = vadd.f32 %v71, %v72
    %117 = vadd.xlane.f32.xlu0 %v116
    %v118 = vpop.xlane.xlu0 %117
    %v119 = vadd.f32 %v73, %v74
    %120 = vadd.xlane.f32.xlu0 %v119
    %v121 = vpop.xlane.xlu0 %120
    %v122 = vadd.f32 %v75, %v76
    %123 = vadd.xlane.f32.xlu0 %v122
    %v124 = vpop.xlane.xlu0 %123
    %v125 = vmul.f32 %v79, 0.00390625
    %v126 = vmul.f32 %v82, 0.00390625
    %v127 = vmul.f32 %v85, 0.00390625
    %v128 = vmul.f32 %v88, 0.00390625
    %v129 = vmul.f32 %v91, 0.00390625
    %v130 = vmul.f32 %v94, 0.00390625
    %v131 = vmul.f32 %v97, 0.00390625
    %v132 = vmul.f32 %v100, 0.00390625
    %v133 = vmul.f32 %v103, 0.00390625
    %v134 = vmul.f32 %v106, 0.00390625
    %v135 = vmul.f32 %v109, 0.00390625
    %v136 = vmul.f32 %v112, 0.00390625
    %v137 = vmul.f32 %v115, 0.00390625
    %v138 = vmul.f32 %v118, 0.00390625
    %v139 = vmul.f32 %v121, 0.00390625
    %v140 = vmul.f32 %v124, 0.00390625
    %v141 = vmax.f32 %v45, %v46
    %142 = vmax.xlane.f32.xlu0 %v141
    %v143 = vpop.xlane.xlu0 %142
    %v144 = vmax.f32 %v47, %v48
    %145 = vmax.xlane.f32.xlu0 %v144
    %v146 = vpop.xlane.xlu0 %145
    %v147 = vmax.f32 %v49, %v50
    %148 = vmax.xlane.f32.xlu0 %v147
    %v149 = vpop.xlane.xlu0 %148
    %v150 = vmax.f32 %v51, %v52
    %151 = vmax.xlane.f32.xlu0 %v150
    %v152 = vpop.xlane.xlu0 %151
    %v153 = vmax.f32 %v53, %v54
    %154 = vmax.xlane.f32.xlu0 %v153
    %v155 = vpop.xlane.xlu0 %154
    %v156 = vmax.f32 %v55, %v56
    %157 = vmax.xlane.f32.xlu0 %v156
    %v158 = vpop.xlane.xlu0 %157
    %v159 = vmax.f32 %v57, %v58
    %160 = vmax.xlane.f32.xlu0 %v159
    %v161 = vpop.xlane.xlu0 %160
    %v162 = vmax.f32 %v59, %v60
    %163 = vmax.xlane.f32.xlu0 %v162
    %v164 = vpop.xlane.xlu0 %163
    %v165 = vmax.f32 %v61, %v62
    %166 = vmax.xlane.f32.xlu0 %v165
    %v167 = vpop.xlane.xlu0 %166
    %v168 = vmax.f32 %v63, %v64
    %169 = vmax.xlane.f32.xlu0 %v168
    %v170 = vpop.xlane.xlu0 %169
    %v171 = vmax.f32 %v65, %v66
    %172 = vmax.xlane.f32.xlu0 %v171
    %v173 = vpop.xlane.xlu0 %172
    %v174 = vmax.f32 %v67, %v68
    %175 = vmax.xlane.f32.xlu0 %v174
    %v176 = vpop.xlane.xlu0 %175
    %v177 = vmax.f32 %v69, %v70
    %178 = vmax.xlane.f32.xlu0 %v177
    %v179 = vpop.xlane.xlu0 %178
    %v180 = vmax.f32 %v71, %v72
    %181 = vmax.xlane.f32.xlu0 %v180
    %v182 = vpop.xlane.xlu0 %181
    %v183 = vmax.f32 %v73, %v74
    %184 = vmax.xlane.f32.xlu0 %v183
    %v185 = vpop.xlane.xlu0 %184
    %v186 = vmax.f32 %v75, %v76
    %187 = vmax.xlane.f32.xlu0 %v186
    %v188 = vpop.xlane.xlu0 %187
    %v189 = vld [vmem:[%s1] sm:$0xff]
    %v190 = vld [vmem:[%s1 + $0x8] sm:$0xff]
    %v191 = vld [vmem:[%s1 + $0x10] sm:$0xff]
    %v192 = vld [vmem:[%s1 + $0x18] sm:$0xff]
    %v193 = vld [vmem:[%s1 + $0x20] sm:$0xff]
    %v194 = vld [vmem:[%s1 + $0x28] sm:$0xff]
    %v195 = vld [vmem:[%s1 + $0x30] sm:$0xff]
    %v196 = vld [vmem:[%s1 + $0x38] sm:$0xff]
    %v197 = vld [vmem:[%s2] sm:$0xf]
    %v214 = vlaneseq
    %v215 = vand.u32 %v214, 127
    %v216 = vlaneseq
    %v217 = vshrl.u32 %v216, 7
    %v218 = vsub.s32 %v215, %v217
    %v219 = vrot.slane %v125, %v218
    %v220 = vadd.s32 %v215, 4294967288
    %v221 = vlaneseq
    %v222 = vshrl.u32 %v221, 7
    %v223 = vsub.s32 %v220, %v222
    %v224 = vrot.slane %v126, %v223
    %vm225 = vcmask 130112
    %v226 = vsel %vm225, %v224, %v219
    %v227 = vadd.s32 %v215, 4294967280
    %v228 = vlaneseq
    %v229 = vshrl.u32 %v228, 7
    %v230 = vsub.s32 %v227, %v229
    %v231 = vrot.slane %v127, %v230
    %vm232 = vcmask 195712
    %v233 = vsel %vm232, %v231, %v226
    %v234 = vadd.s32 %v215, 4294967272
    %v235 = vlaneseq
    %v236 = vshrl.u32 %v235, 7
    %v237 = vsub.s32 %v234, %v236
    %v238 = vrot.slane %v128, %v237
    %vm239 = vcmask 261312
    %v240 = vsel %vm239, %v238, %v233
    %v241 = vadd.s32 %v215, 4294967264
    %v242 = vlaneseq
    %v243 = vshrl.u32 %v242, 7
    %v244 = vsub.s32 %v241, %v243
    %v245 = vrot.slane %v129, %v244
    %vm246 = vcmask 326912
    %v247 = vsel %vm246, %v245, %v240
    %v248 = vadd.s32 %v215, 4294967256
    %v249 = vlaneseq
    %v250 = vshrl.u32 %v249, 7
    %v251 = vsub.s32 %v248, %v250
    %v252 = vrot.slane %v130, %v251
    %vm253 = vcmask 392512
    %v254 = vsel %vm253, %v252, %v247
    %v255 = vadd.s32 %v215, 4294967248
    %v256 = vlaneseq
    %v257 = vshrl.u32 %v256, 7
    %v258 = vsub.s32 %v255, %v257
    %v259 = vrot.slane %v131, %v258
    %vm260 = vcmask 458112
    %v261 = vsel %vm260, %v259, %v254
    %v262 = vadd.s32 %v215, 4294967240
    %v263 = vlaneseq
    %v264 = vshrl.u32 %v263, 7
    %v265 = vsub.s32 %v262, %v264
    %v266 = vrot.slane %v132, %v265
    %vm267 = vcmask 523712
    %v268 = vsel %vm267, %v266, %v261
    %v269 = vlaneseq
    %v270 = vshrl.u32 %v269, 7
    %v271 = vsub.s32 %v215, %v270
    %v272 = vrot.slane %v133, %v271
    %v273 = vlaneseq
    %v274 = vshrl.u32 %v273, 7
    %v275 = vsub.s32 %v220, %v274
    %v276 = vrot.slane %v134, %v275
    %v277 = vsel %vm225, %v276, %v272
    %v278 = vlaneseq
    %v279 = vshrl.u32 %v278, 7
    %v280 = vsub.s32 %v227, %v279
    %v281 = vrot.slane %v135, %v280
    %v282 = vsel %vm232, %v281, %v277
    %v283 = vlaneseq
    %v284 = vshrl.u32 %v283, 7
    %v285 = vsub.s32 %v234, %v284
    %v286 = vrot.slane %v136, %v285
    %v287 = vsel %vm239, %v286, %v282
    %v288 = vlaneseq
    %v289 = vshrl.u32 %v288, 7
    %v290 = vsub.s32 %v241, %v289
    %v291 = vrot.slane %v137, %v290
    %v292 = vsel %vm246, %v291, %v287
    %v293 = vlaneseq
    %v294 = vshrl.u32 %v293, 7
    %v295 = vsub.s32 %v248, %v294
    %v296 = vrot.slane %v138, %v295
    %v297 = vsel %vm253, %v296, %v292
    %v298 = vlaneseq
    %v299 = vshrl.u32 %v298, 7
    %v300 = vsub.s32 %v255, %v299
    %v301 = vrot.slane %v139, %v300
    %v302 = vsel %vm260, %v301, %v297
    %v303 = vlaneseq
    %v304 = vshrl.u32 %v303, 7
    %v305 = vsub.s32 %v262, %v304
    %v306 = vrot.slane %v140, %v305
    %v307 = vsel %vm267, %v306, %v302
    %vm308 = vcmask 1041409
    %v309 = vsel %vm308, %v307, %v268
    %vm310 = vcmask 523264
    %v311 = vsel %vm310, %v309, 0
    %313 = vmatprep.subr.mxu0 0.0
    %314 = vmatpush1.msra.mxu0 %v189
    %315 = vmatprep.subr.mxu0 0.0
    %316 = vmatpush1.msra.mxu0 %v190
    %317 = vmatprep.subr.mxu0 0.0
    %318 = vmatpush1.msra.mxu0 %v191
    %319 = vmatprep.subr.mxu0 0.0
    %320 = vmatpush1.msra.mxu0 %v192
    %321 = vmatprep.subr.mxu0 0.0
    %322 = vmatpush1.msra.mxu0 %v193
    %323 = vmatprep.subr.mxu0 0.0
    %324 = vmatpush1.msra.mxu0 %v194
    %325 = vmatprep.subr.mxu0 0.0
    %326 = vmatpush1.msra.mxu0 %v195
    %327 = vmatprep.subr.mxu0 0.0
    %328 = vmatpush1.msra.mxu0 %v196
    %329 = vmatprep.subr.mxu0 0.0
    %330 = vmatpush1.msra.mxu0 0.0
    %331 = vmatprep.subr.mxu0 0.0
    %332 = vmatpush1.msra.mxu0 0.0
    %333 = vmatprep.subr.mxu0 0.0
    %334 = vmatpush1.msra.mxu0 0.0
    %335 = vmatprep.subr.mxu0 0.0
    %336 = vmatpush1.msra.mxu0 0.0
    %337 = vmatprep.subr.mxu0 0.0
    %338 = vmatpush1.msra.mxu0 0.0
    %339 = vmatprep.subr.mxu0 0.0
    %340 = vmatpush1.msra.mxu0 0.0
    %341 = vmatprep.subr.mxu0 0.0
    %342 = vmatpush1.msra.mxu0 0.0
    %343 = vmatprep.subr.mxu0 0.0
    %344 = vmatpush1.msra.mxu0 0.0
    %345 = vmatprep.subr.mxu0 0.0
    %346 = vmatpush1.msra.mxu0 0.0
    %347 = vmatprep.subr.mxu0 0.0
    %348 = vmatpush1.msra.mxu0 0.0
    %349 = vmatprep.subr.mxu0 0.0
    %350 = vmatpush1.msra.mxu0 0.0
    %351 = vmatprep.subr.mxu0 0.0
    %352 = vmatpush1.msra.mxu0 0.0
    %353 = vmatprep.subr.mxu0 0.0
    %354 = vmatpush1.msra.mxu0 0.0
    %355 = vmatprep.subr.mxu0 0.0
    %356 = vmatpush1.msra.mxu0 0.0
    %357 = vmatprep.subr.mxu0 0.0
    %358 = vmatpush1.msra.mxu0 0.0
    %359 = vmatprep.subr.mxu0 0.0
    %360 = vmatpush1.msra.mxu0 0.0
    %361 = vmatprep.subr.mxu0 0.0
    %362 = vmatpush1.msra.mxu0 0.0
    %363 = vmatprep.subr.mxu0 0.0
    %364 = vmatpush1.msra.mxu0 0.0
    %365 = vmatprep.subr.mxu0 0.0
    %366 = vmatpush1.msra.mxu0 0.0
    %367 = vmatprep.subr.mxu0 0.0
    %368 = vmatpush1.msra.mxu0 0.0
    %369 = vmatprep.subr.mxu0 0.0
    %370 = vmatpush1.msra.mxu0 0.0
    %371 = vmatprep.subr.mxu0 0.0
    %372 = vmatpush1.msra.mxu0 0.0
    %373 = vmatprep.subr.mxu0 0.0
    %374 = vmatpush1.msra.mxu0 0.0
    %375 = vmatprep.subr.mxu0 0.0
    %376 = vmatpush1.msra.mxu0 0.0
    %377 = vmatprep.mubr.f32.mxu0 0.0
    %378 = vmatmul.mubr.f32.gmra.mrb[0].mxu0 %v311
    %v379 = vpop.f32.mrb[0].mxu0
    %v380 = vadd.f32 0.0, %v379
    %v381 = vpop.f32.mrb[0].mxu0
    %382 = vdwg.mxu0
    %v383 = vmax.f32 %v380, 0.0
    %v400 = vlaneseq
    %v401 = vshrl.u32 %v400, 7
    %v402 = vsub.s32 %v215, %v401
    %v403 = vrot.slane %v143, %v402
    %v404 = vlaneseq
    %v405 = vshrl.u32 %v404, 7
    %v406 = vsub.s32 %v220, %v405
    %v407 = vrot.slane %v146, %v406
    %v408 = vsel %vm225, %v407, %v403
    %v409 = vlaneseq
    %v410 = vshrl.u32 %v409, 7
    %v411 = vsub.s32 %v227, %v410
    %v412 = vrot.slane %v149, %v411
    %v413 = vsel %vm232, %v412, %v408
    %v414 = vlaneseq
    %v415 = vshrl.u32 %v414, 7
    %v416 = vsub.s32 %v234, %v415
    %v417 = vrot.slane %v152, %v416
    %v418 = vsel %vm239, %v417, %v413
    %v419 = vlaneseq
    %v420 = vshrl.u32 %v419, 7
    %v421 = vsub.s32 %v241, %v420
    %v422 = vrot.slane %v155, %v421
    %v423 = vsel %vm246, %v422, %v418
    %v424 = vlaneseq
    %v425 = vshrl.u32 %v424, 7
    %v426 = vsub.s32 %v248, %v425
    %v427 = vrot.slane %v158, %v426
    %v428 = vsel %vm253, %v427, %v423
    %v429 = vlaneseq
    %v430 = vshrl.u32 %v429, 7
    %v431 = vsub.s32 %v255, %v430
    %v432 = vrot.slane %v161, %v431
    %v433 = vsel %vm260, %v432, %v428
    %v434 = vlaneseq
    %v435 = vshrl.u32 %v434, 7
    %v436 = vsub.s32 %v262, %v435
    %v437 = vrot.slane %v164, %v436
    %v438 = vsel %vm267, %v437, %v433
    %v439 = vlaneseq
    %v440 = vshrl.u32 %v439, 7
    %v441 = vsub.s32 %v215, %v440
    %v442 = vrot.slane %v167, %v441
    %v443 = vlaneseq
    %v444 = vshrl.u32 %v443, 7
    %v445 = vsub.s32 %v220, %v444
    %v446 = vrot.slane %v170, %v445
    %v447 = vsel %vm225, %v446, %v442
    %v448 = vlaneseq
    %v449 = vshrl.u32 %v448, 7
    %v450 = vsub.s32 %v227, %v449
    %v451 = vrot.slane %v173, %v450
    %v452 = vsel %vm232, %v451, %v447
    %v453 = vlaneseq
    %v454 = vshrl.u32 %v453, 7
    %v455 = vsub.s32 %v234, %v454
    %v456 = vrot.slane %v176, %v455
    %v457 = vsel %vm239, %v456, %v452
    %v458 = vlaneseq
    %v459 = vshrl.u32 %v458, 7
    %v460 = vsub.s32 %v241, %v459
    %v461 = vrot.slane %v179, %v460
    %v462 = vsel %vm246, %v461, %v457
    %v463 = vlaneseq
    %v464 = vshrl.u32 %v463, 7
    %v465 = vsub.s32 %v248, %v464
    %v466 = vrot.slane %v182, %v465
    %v467 = vsel %vm253, %v466, %v462
    %v468 = vlaneseq
    %v469 = vshrl.u32 %v468, 7
    %v470 = vsub.s32 %v255, %v469
    %v471 = vrot.slane %v185, %v470
    %v472 = vsel %vm260, %v471, %v467
    %v473 = vlaneseq
    %v474 = vshrl.u32 %v473, 7
    %v475 = vsub.s32 %v262, %v474
    %v476 = vrot.slane %v188, %v475
    %v477 = vsel %vm267, %v476, %v472
    %v478 = vsel %vm308, %v477, %v438
    %v479 = vsel %vm310, %v478, 0
    %481 = vmatprep.subr.mxu0 0.0
    %482 = vmatpush1.msra.mxu0 %v189
    %483 = vmatprep.subr.mxu0 0.0
    %484 = vmatpush1.msra.mxu0 %v190
    %485 = vmatprep.subr.mxu0 0.0
    %486 = vmatpush1.msra.mxu0 %v191
    %487 = vmatprep.subr.mxu0 0.0
    %488 = vmatpush1.msra.mxu0 %v192
    %489 = vmatprep.subr.mxu0 0.0
    %490 = vmatpush1.msra.mxu0 %v193
    %491 = vmatprep.subr.mxu0 0.0
    %492 = vmatpush1.msra.mxu0 %v194
    %493 = vmatprep.subr.mxu0 0.0
    %494 = vmatpush1.msra.mxu0 %v195
    %495 = vmatprep.subr.mxu0 0.0
    %496 = vmatpush1.msra.mxu0 %v196
    %497 = vmatprep.subr.mxu0 0.0
    %498 = vmatpush1.msra.mxu0 0.0
    %499 = vmatprep.subr.mxu0 0.0
    %500 = vmatpush1.msra.mxu0 0.0
    %501 = vmatprep.subr.mxu0 0.0
    %502 = vmatpush1.msra.mxu0 0.0
    %503 = vmatprep.subr.mxu0 0.0
    %504 = vmatpush1.msra.mxu0 0.0
    %505 = vmatprep.subr.mxu0 0.0
    %506 = vmatpush1.msra.mxu0 0.0
    %507 = vmatprep.subr.mxu0 0.0
    %508 = vmatpush1.msra.mxu0 0.0
    %509 = vmatprep.subr.mxu0 0.0
    %510 = vmatpush1.msra.mxu0 0.0
    %511 = vmatprep.subr.mxu0 0.0
    %512 = vmatpush1.msra.mxu0 0.0
    %513 = vmatprep.subr.mxu0 0.0
    %514 = vmatpush1.msra.mxu0 0.0
    %515 = vmatprep.subr.mxu0 0.0
    %516 = vmatpush1.msra.mxu0 0.0
    %517 = vmatprep.subr.mxu0 0.0
    %518 = vmatpush1.msra.mxu0 0.0
    %519 = vmatprep.subr.mxu0 0.0
    %520 = vmatpush1.msra.mxu0 0.0
    %521 = vmatprep.subr.mxu0 0.0
    %522 = vmatpush1.msra.mxu0 0.0
    %523 = vmatprep.subr.mxu0 0.0
    %524 = vmatpush1.msra.mxu0 0.0
    %525 = vmatprep.subr.mxu0 0.0
    %526 = vmatpush1.msra.mxu0 0.0
    %527 = vmatprep.subr.mxu0 0.0
    %528 = vmatpush1.msra.mxu0 0.0
    %529 = vmatprep.subr.mxu0 0.0
    %530 = vmatpush1.msra.mxu0 0.0
    %531 = vmatprep.subr.mxu0 0.0
    %532 = vmatpush1.msra.mxu0 0.0
    %533 = vmatprep.subr.mxu0 0.0
    %534 = vmatpush1.msra.mxu0 0.0
    %535 = vmatprep.subr.mxu0 0.0
    %536 = vmatpush1.msra.mxu0 0.0
    %537 = vmatprep.subr.mxu0 0.0
    %538 = vmatpush1.msra.mxu0 0.0
    %539 = vmatprep.subr.mxu0 0.0
    %540 = vmatpush1.msra.mxu0 0.0
    %541 = vmatprep.subr.mxu0 0.0
    %542 = vmatpush1.msra.mxu0 0.0
    %543 = vmatprep.subr.mxu0 0.0
    %544 = vmatpush1.msra.mxu0 0.0
    %545 = vmatprep.mubr.f32.mxu0 0.0
    %546 = vmatmul.mubr.f32.gmra.mrb[0].mxu0 %v479
    %v547 = vpop.f32.mrb[0].mxu0
    %v548 = vadd.f32 0.0, %v547
    %v549 = vpop.f32.mrb[0].mxu0
    %550 = vdwg.mxu0
    %v551 = vmax.f32 %v548, 0.0
    %vm552 = vcmask 31744
    %v554 = vsel %vm552, %v551, 0
    %vm556 = vcmask 1043456
    %v558 = vsel %vm556, %v197, 0
    %560 = vmatprep.subr.mxu0 0.0
    %561 = vmatpush1.msra.mxu0 %v558
    %562 = vmatprep.subr.mxu0 0.0
    %563 = vmatpush1.msra.mxu0 0.0
    %564 = vmatprep.subr.mxu0 0.0
    %565 = vmatpush1.msra.mxu0 0.0
    %566 = vmatprep.subr.mxu0 0.0
    %567 = vmatpush1.msra.mxu0 0.0
    %568 = vmatprep.subr.mxu0 0.0
    %569 = vmatpush1.msra.mxu0 0.0
    %570 = vmatprep.subr.mxu0 0.0
    %571 = vmatpush1.msra.mxu0 0.0
    %572 = vmatprep.subr.mxu0 0.0
    %573 = vmatpush1.msra.mxu0 0.0
    %574 = vmatprep.subr.mxu0 0.0
    %575 = vmatpush1.msra.mxu0 0.0
    %576 = vmatprep.subr.mxu0 0.0
    %577 = vmatpush1.msra.mxu0 0.0
    %578 = vmatprep.subr.mxu0 0.0
    %579 = vmatpush1.msra.mxu0 0.0
    %580 = vmatprep.subr.mxu0 0.0
    %581 = vmatpush1.msra.mxu0 0.0
    %582 = vmatprep.subr.mxu0 0.0
    %583 = vmatpush1.msra.mxu0 0.0
    %584 = vmatprep.subr.mxu0 0.0
    %585 = vmatpush1.msra.mxu0 0.0
    %586 = vmatprep.subr.mxu0 0.0
    %587 = vmatpush1.msra.mxu0 0.0
    %588 = vmatprep.subr.mxu0 0.0
    %589 = vmatpush1.msra.mxu0 0.0
    %590 = vmatprep.subr.mxu0 0.0
    %591 = vmatpush1.msra.mxu0 0.0
    %592 = vmatprep.subr.mxu0 0.0
    %593 = vmatpush1.msra.mxu0 0.0
    %594 = vmatprep.subr.mxu0 0.0
    %595 = vmatpush1.msra.mxu0 0.0
    %596 = vmatprep.subr.mxu0 0.0
    %597 = vmatpush1.msra.mxu0 0.0
    %598 = vmatprep.subr.mxu0 0.0
    %599 = vmatpush1.msra.mxu0 0.0
    %600 = vmatprep.subr.mxu0 0.0
    %601 = vmatpush1.msra.mxu0 0.0
    %602 = vmatprep.subr.mxu0 0.0
    %603 = vmatpush1.msra.mxu0 0.0
    %604 = vmatprep.subr.mxu0 0.0
    %605 = vmatpush1.msra.mxu0 0.0
    %606 = vmatprep.subr.mxu0 0.0
    %607 = vmatpush1.msra.mxu0 0.0
    %608 = vmatprep.subr.mxu0 0.0
    %609 = vmatpush1.msra.mxu0 0.0
    %610 = vmatprep.subr.mxu0 0.0
    %611 = vmatpush1.msra.mxu0 0.0
    %612 = vmatprep.subr.mxu0 0.0
    %613 = vmatpush1.msra.mxu0 0.0
    %614 = vmatprep.subr.mxu0 0.0
    %615 = vmatpush1.msra.mxu0 0.0
    %616 = vmatprep.subr.mxu0 0.0
    %617 = vmatpush1.msra.mxu0 0.0
    %618 = vmatprep.subr.mxu0 0.0
    %619 = vmatpush1.msra.mxu0 0.0
    %620 = vmatprep.subr.mxu0 0.0
    %621 = vmatpush1.msra.mxu0 0.0
    %622 = vmatprep.subr.mxu0 0.0
    %623 = vmatpush1.msra.mxu0 0.0
    %624 = vmatprep.mubr.f32.mxu0 0.0
    %625 = vmatmul.mubr.f32.gmra.mrb[0].mxu0 %v554
    %v626 = vpop.f32.mrb[0].mxu0
    %v627 = vadd.f32 0.0, %v626
    %v628 = vpop.f32.mrb[0].mxu0
    %629 = vdwg.mxu0
    %v631 = vsel %vm552, %v383, 0
    %633 = vmatprep.subr.mxu0 0.0
    %634 = vmatpush1.msra.mxu0 %v558
    %635 = vmatprep.subr.mxu0 0.0
    %636 = vmatpush1.msra.mxu0 0.0
    %637 = vmatprep.subr.mxu0 0.0
    %638 = vmatpush1.msra.mxu0 0.0
    %639 = vmatprep.subr.mxu0 0.0
    %640 = vmatpush1.msra.mxu0 0.0
    %641 = vmatprep.subr.mxu0 0.0
    %642 = vmatpush1.msra.mxu0 0.0
    %643 = vmatprep.subr.mxu0 0.0
    %644 = vmatpush1.msra.mxu0 0.0
    %645 = vmatprep.subr.mxu0 0.0
    %646 = vmatpush1.msra.mxu0 0.0
    %647 = vmatprep.subr.mxu0 0.0
    %648 = vmatpush1.msra.mxu0 0.0
    %649 = vmatprep.subr.mxu0 0.0
    %650 = vmatpush1.msra.mxu0 0.0
    %651 = vmatprep.subr.mxu0 0.0
    %652 = vmatpush1.msra.mxu0 0.0
    %653 = vmatprep.subr.mxu0 0.0
    %654 = vmatpush1.msra.mxu0 0.0
    %655 = vmatprep.subr.mxu0 0.0
    %656 = vmatpush1.msra.mxu0 0.0
    %657 = vmatprep.subr.mxu0 0.0
    %658 = vmatpush1.msra.mxu0 0.0
    %659 = vmatprep.subr.mxu0 0.0
    %660 = vmatpush1.msra.mxu0 0.0
    %661 = vmatprep.subr.mxu0 0.0
    %662 = vmatpush1.msra.mxu0 0.0
    %663 = vmatprep.subr.mxu0 0.0
    %664 = vmatpush1.msra.mxu0 0.0
    %665 = vmatprep.subr.mxu0 0.0
    %666 = vmatpush1.msra.mxu0 0.0
    %667 = vmatprep.subr.mxu0 0.0
    %668 = vmatpush1.msra.mxu0 0.0
    %669 = vmatprep.subr.mxu0 0.0
    %670 = vmatpush1.msra.mxu0 0.0
    %671 = vmatprep.subr.mxu0 0.0
    %672 = vmatpush1.msra.mxu0 0.0
    %673 = vmatprep.subr.mxu0 0.0
    %674 = vmatpush1.msra.mxu0 0.0
    %675 = vmatprep.subr.mxu0 0.0
    %676 = vmatpush1.msra.mxu0 0.0
    %677 = vmatprep.subr.mxu0 0.0
    %678 = vmatpush1.msra.mxu0 0.0
    %679 = vmatprep.subr.mxu0 0.0
    %680 = vmatpush1.msra.mxu0 0.0
    %681 = vmatprep.subr.mxu0 0.0
    %682 = vmatpush1.msra.mxu0 0.0
    %683 = vmatprep.subr.mxu0 0.0
    %684 = vmatpush1.msra.mxu0 0.0
    %685 = vmatprep.subr.mxu0 0.0
    %686 = vmatpush1.msra.mxu0 0.0
    %687 = vmatprep.subr.mxu0 0.0
    %688 = vmatpush1.msra.mxu0 0.0
    %689 = vmatprep.subr.mxu0 0.0
    %690 = vmatpush1.msra.mxu0 0.0
    %691 = vmatprep.subr.mxu0 0.0
    %692 = vmatpush1.msra.mxu0 0.0
    %693 = vmatprep.subr.mxu0 0.0
    %694 = vmatpush1.msra.mxu0 0.0
    %695 = vmatprep.subr.mxu0 0.0
    %696 = vmatpush1.msra.mxu0 0.0
    %697 = vmatprep.mubr.f32.mxu0 0.0
    %698 = vmatmul.mubr.f32.gmra.mrb[0].mxu0 %v631
    %v699 = vpop.f32.mrb[0].mxu0
    %v700 = vadd.f32 %v627, %v699
    %v701 = vpop.f32.mrb[0].mxu0
    %702 = vdwg.mxu0
    %v703 = vxor.u32 %v700, 2147483648
    %v704 = vmul.f32 %v703, 1.442695
    %v705 = vpow.pop %v704
    %v706 = vadd.f32 %v705, 1.0
    %v707 = vrcp.pop %v706
    %v708 = vmul.f32 1.0, %v707
    %v709 = vlaneseq
    %v710 = vshrl.u32 %v709, 7
    %v711 = vsub.s32 0, %v710
    %v712 = vrot.slane %v708, %v711
    %714 = vbcast.lane.b32.xlu0 %v712, 256
    %v715 = vpop.permute.xlu0 %714
    %s717 = sor.u32 256, 8
    %718 = vbcast.lane.b32.xlu0 %v712, %s717
    %v719 = vpop.permute.xlu0 %718
    %s721 = sor.u32 256, 16
    %722 = vbcast.lane.b32.xlu0 %v712, %s721
    %v723 = vpop.permute.xlu0 %722
    %s725 = sor.u32 256, 24
    %726 = vbcast.lane.b32.xlu0 %v712, %s725
    %v727 = vpop.permute.xlu0 %726
    %s729 = sor.u32 256, 32
    %730 = vbcast.lane.b32.xlu0 %v712, %s729
    %v731 = vpop.permute.xlu0 %730
    %s733 = sor.u32 256, 40
    %734 = vbcast.lane.b32.xlu0 %v712, %s733
    %v735 = vpop.permute.xlu0 %734
    %s737 = sor.u32 256, 48
    %738 = vbcast.lane.b32.xlu0 %v712, %s737
    %v739 = vpop.permute.xlu0 %738
    %s741 = sor.u32 256, 56
    %742 = vbcast.lane.b32.xlu0 %v712, %s741
    %v743 = vpop.permute.xlu0 %742
    %v744 = vlaneseq
    %v745 = vshrl.u32 %v744, 7
    %v746 = vsub.s32 1, %v745
    %v747 = vrot.slane %v708, %v746
    %749 = vbcast.lane.b32.xlu0 %v747, 256
    %v750 = vpop.permute.xlu0 %749
    %s752 = sor.u32 256, 8
    %753 = vbcast.lane.b32.xlu0 %v747, %s752
    %v754 = vpop.permute.xlu0 %753
    %s756 = sor.u32 256, 16
    %757 = vbcast.lane.b32.xlu0 %v747, %s756
    %v758 = vpop.permute.xlu0 %757
    %s760 = sor.u32 256, 24
    %761 = vbcast.lane.b32.xlu0 %v747, %s760
    %v762 = vpop.permute.xlu0 %761
    %s764 = sor.u32 256, 32
    %765 = vbcast.lane.b32.xlu0 %v747, %s764
    %v766 = vpop.permute.xlu0 %765
    %s768 = sor.u32 256, 40
    %769 = vbcast.lane.b32.xlu0 %v747, %s768
    %v770 = vpop.permute.xlu0 %769
    %s772 = sor.u32 256, 48
    %773 = vbcast.lane.b32.xlu0 %v747, %s772
    %v774 = vpop.permute.xlu0 %773
    %s776 = sor.u32 256, 56
    %777 = vbcast.lane.b32.xlu0 %v747, %s776
    %v778 = vpop.permute.xlu0 %777
    %v779 = vmul.f32 %v45, %v715
    %v780 = vmul.f32 %v46, %v715
    %v781 = vmul.f32 %v47, %v719
    %v782 = vmul.f32 %v48, %v719
    %v783 = vmul.f32 %v49, %v723
    %v784 = vmul.f32 %v50, %v723
    %v785 = vmul.f32 %v51, %v727
    %v786 = vmul.f32 %v52, %v727
    %v787 = vmul.f32 %v53, %v731
    %v788 = vmul.f32 %v54, %v731
    %v789 = vmul.f32 %v55, %v735
    %v790 = vmul.f32 %v56, %v735
    %v791 = vmul.f32 %v57, %v739
    %v792 = vmul.f32 %v58, %v739
    %v793 = vmul.f32 %v59, %v743
    %v794 = vmul.f32 %v60, %v743
    %v795 = vmul.f32 %v61, %v750
    %v796 = vmul.f32 %v62, %v750
    %v797 = vmul.f32 %v63, %v754
    %v798 = vmul.f32 %v64, %v754
    %v799 = vmul.f32 %v65, %v758
    %v800 = vmul.f32 %v66, %v758
    %v801 = vmul.f32 %v67, %v762
    %v802 = vmul.f32 %v68, %v762
    %v803 = vmul.f32 %v69, %v766
    %v804 = vmul.f32 %v70, %v766
    %v805 = vmul.f32 %v71, %v770
    %v806 = vmul.f32 %v72, %v770
    %v807 = vmul.f32 %v73, %v774
    %v808 = vmul.f32 %v74, %v774
    %v809 = vmul.f32 %v75, %v778
    %v810 = vmul.f32 %v76, %v778
    %v811 = vpack.c.bf16 %v781, %v779
    %v812 = vpack.c.bf16 %v782, %v780
    %v813 = vpack.c.bf16 %v785, %v783
    %v814 = vpack.c.bf16 %v786, %v784
    %v815 = vpack.c.bf16 %v789, %v787
    %v816 = vpack.c.bf16 %v790, %v788
    %v817 = vpack.c.bf16 %v793, %v791
    %v818 = vpack.c.bf16 %v794, %v792
    %v819 = vpack.c.bf16 %v797, %v795
    %v820 = vpack.c.bf16 %v798, %v796
    %v821 = vpack.c.bf16 %v801, %v799
    %v822 = vpack.c.bf16 %v802, %v800
    %v823 = vpack.c.bf16 %v805, %v803
    %v824 = vpack.c.bf16 %v806, %v804
    %v825 = vpack.c.bf16 %v809, %v807
    %v826 = vpack.c.bf16 %v810, %v808
    %v843 = vunpack.c.l.b16 %v811
    %v844 = vunpack.c.l.b16 %v812
    %v845 = vunpack.c.h.b16 %v811
    %v846 = vunpack.c.h.b16 %v812
    %v847 = vunpack.c.l.b16 %v813
    %v848 = vunpack.c.l.b16 %v814
    %v849 = vunpack.c.h.b16 %v813
    %v850 = vunpack.c.h.b16 %v814
    %v851 = vunpack.c.l.b16 %v815
    %v852 = vunpack.c.l.b16 %v816
    %v853 = vunpack.c.h.b16 %v815
    %v854 = vunpack.c.h.b16 %v816
    %v855 = vunpack.c.l.b16 %v817
    %v856 = vunpack.c.l.b16 %v818
    %v857 = vunpack.c.h.b16 %v817
    %v858 = vunpack.c.h.b16 %v818
    %v859 = vunpack.c.l.b16 %v819
    %v860 = vunpack.c.l.b16 %v820
    %v861 = vunpack.c.h.b16 %v819
    %v862 = vunpack.c.h.b16 %v820
    %v863 = vunpack.c.l.b16 %v821
    %v864 = vunpack.c.l.b16 %v822
    %v865 = vunpack.c.h.b16 %v821
    %v866 = vunpack.c.h.b16 %v822
    %v867 = vunpack.c.l.b16 %v823
    %v868 = vunpack.c.l.b16 %v824
    %v869 = vunpack.c.h.b16 %v823
    %v870 = vunpack.c.h.b16 %v824
    %v871 = vunpack.c.l.b16 %v825
    %v872 = vunpack.c.l.b16 %v826
    %v873 = vunpack.c.h.b16 %v825
    %v874 = vunpack.c.h.b16 %v826
    %v875 = vpack.c.b16 %v844, %v843
    %v876 = vpack.c.b16 %v846, %v845
    %v877 = vpack.c.b16 %v848, %v847
    %v878 = vpack.c.b16 %v850, %v849
    %v879 = vpack.c.b16 %v852, %v851
    %v880 = vpack.c.b16 %v854, %v853
    %v881 = vpack.c.b16 %v856, %v855
    %v882 = vpack.c.b16 %v858, %v857
    %v883 = vpack.c.b16 %v860, %v859
    %v884 = vpack.c.b16 %v862, %v861
    %v885 = vpack.c.b16 %v864, %v863
    %v886 = vpack.c.b16 %v866, %v865
    %v887 = vpack.c.b16 %v868, %v867
    %v888 = vpack.c.b16 %v870, %v869
    %v889 = vpack.c.b16 %v872, %v871
    %v890 = vpack.c.b16 %v874, %v873
    %907 = vst [vmem:[#allocation5] sm:$0xff] %v875
    %908 = vst [vmem:[#allocation5 + $0x8] sm:$0xff] %v876
    %909 = vst [vmem:[#allocation5 + $0x10] sm:$0xff] %v877
    %910 = vst [vmem:[#allocation5 + $0x18] sm:$0xff] %v878
    %911 = vst [vmem:[#allocation5 + $0x20] sm:$0xff] %v879
    %912 = vst [vmem:[#allocation5 + $0x28] sm:$0xff] %v880
    %913 = vst [vmem:[#allocation5 + $0x30] sm:$0xff] %v881
    %914 = vst [vmem:[#allocation5 + $0x38] sm:$0xff] %v882
    %915 = vst [vmem:[#allocation5 + $0x40] sm:$0xff] %v883
    %916 = vst [vmem:[#allocation5 + $0x48] sm:$0xff] %v884
    %917 = vst [vmem:[#allocation5 + $0x50] sm:$0xff] %v885
    %918 = vst [vmem:[#allocation5 + $0x58] sm:$0xff] %v886
    %919 = vst [vmem:[#allocation5 + $0x60] sm:$0xff] %v887
    %920 = vst [vmem:[#allocation5 + $0x68] sm:$0xff] %v888
    %921 = vst [vmem:[#allocation5 + $0x70] sm:$0xff] %v889
    %922 = vst [vmem:[#allocation5 + $0x78] sm:$0xff] %v890
    // Predicated region
    $region18: #{tpu_custom_call.1} parent=1 // pred_check
      _
    $region19: #{tpu_custom_call.1} parent=1 // pred_check_branch
      %924 = sbr.rel (0) target = $region21
    $region20: #{tpu_custom_call.1} parent=1 // pred_region
      %s926 = ssub.s32 2048, 2048
      %927 = vsyncadd [#allocation4], %s926
      %s928 = sshll.u32 [#allocation5], 4
      %s929 = int_to_ptr.vmem [resolvable:$true] %s928
      %934 = dma.vmem_to_hbm [thread:$0]  %s929, 2048, %s3, [#allocation4], 128, 128, 8
    $region21: #{tpu_custom_call.1} parent=1 // pred_fallthru
      _
    // Predicated region
    $region22: #{tpu_custom_call.1} parent=1 // pred_check
      _
    $region23: #{tpu_custom_call.1} parent=1 // pred_check_branch
      %936 = sbr.rel (0) target = $region25
    $region24: #{tpu_custom_call.1} parent=1 // pred_region
      %937 = dma.done [#allocation4], 2048
    $region25: #{tpu_custom_call.1} parent=1 // pred_fallthru
      _
    %938 = vsyncpa [#allocation3], 1
    %939 = vsyncpa [#allocation4], 1

</llo_original>
